<compile_context>
chip_gen: v5e
topology: v5e:2x2
jax: 0.10.0
libtpu: 0.0.40
codegen_flags: <defaults>
</compile_context>

<pallas_src>
import jax
import jax.numpy as jnp
from jax.experimental import pallas as pl
from jax.experimental.pallas import tpu as pltpu


def _round_up(x, m):
    return (x + m - 1) // m * m


def _cdiv(a, b):
    return (a + b - 1) // b


def _vmem_capacity_bytes():
    try:
        return int(pltpu.get_tpu_info().vmem_capacity_bytes)
    except Exception:
        return 64 * 1024 * 1024  # conservative default: v7x per-TensorCore VMEM


def _phase2d_kernel(x_ref, w_ref, o_ref):
    # One pixel tile per grid step: (B, C) @ (C, TN) -> (B, TN) on the MXU.
    # The bf16 basis tile is promoted in VMEM; accumulation is f32.
    o_ref[...] = jnp.dot(
        x_ref[...], w_ref[...], preferred_element_type=jnp.float32
    ).astype(o_ref.dtype)


def _choose_tile(n_lane, c, basis_bytes, max_batch, vmem_budget):
    """Pick the pixel-tile width from a VMEM budget (generation aware)."""
    per_col = (
        2 * c * basis_bytes      # double-buffered basis tile
        + c * 4                  # f32-promoted basis copy consumed by the dot
        + 2 * max_batch * 4      # double-buffered f32 output tile
    )
    tile_ub = max(128, (vmem_budget // per_col) // 128 * 128)
    # Keep >= 2 grid steps whenever possible so dimension_semantics=("parallel",)
    # can shard the grid across v7x's two TensorCores; balance the tiles to
    # minimise basis padding.
    min_tiles = 2 if n_lane >= 256 else 1
    num_tiles = max(min_tiles, _cdiv(n_lane, tile_ub))
    tile_n = _round_up(_cdiv(n_lane, num_tiles), 128)
    num_tiles = _cdiv(n_lane, tile_n)
    return tile_n, num_tiles


def prepare_phase2d_basis(z_basis, *, dtype=jnp.bfloat16, max_batch=32,
                          force_pallas=False):
    """One-time preparation of the (fixed) Zernike basis.

    Drops mode 0, flattens pixels, casts to the streaming dtype, zero-pads to
    a multiple of the pixel tile and pre-tiles to (num_tiles, C, tile_n) so
    each grid step's fetch is one contiguous DMA.  Cache the result across
    forward calls.  `max_batch` is only a VMEM-budgeting assumption.
    """
    Cp1, H, W = z_basis.shape
    C = Cp1 - 1
    N = H * W
    basis_bytes = jnp.dtype(dtype).itemsize

    # Tiny-problem fallback: XLA's fused matmul beats kernel dispatch +
    # pipeline setup; keep the basis in f32 for exact f32 semantics.
    if not force_pallas and (C * N * basis_bytes + N * 4) < (512 << 10):
        w = z_basis[1:].reshape(C, N).astype(jnp.float32)
        meta = {"kind": "xla", "H": H, "W": W, "C": C, "N": N}
        return w, meta

    n_lane = _round_up(N, 128)
    vmem_budget = int(_vmem_capacity_bytes() * 0.45)  # double-buffered working set
    tile_n, num_tiles = _choose_tile(n_lane, C, basis_bytes, max_batch, vmem_budget)
    n_pad = num_tiles * tile_n

    w = z_basis[1:].reshape(C, N).astype(dtype)
    if n_pad != N:
        w = jnp.pad(w, ((0, 0), (0, n_pad - N)))
    # (num_tiles, C, tile_n): each [t] slab is contiguous -> single large DMA.
    w_tiled = w.reshape(C, num_tiles, tile_n).transpose(1, 0, 2)

    meta = {"kind": "pallas", "H": H, "W": W, "C": C, "N": N,
            "tile_n": tile_n, "num_tiles": num_tiles}
    return w_tiled, meta


def phase2d_apply(x, w, meta, *, out_dtype=jnp.float32):
    """x: (B, C), w/meta from prepare_phase2d_basis -> (B, H, W)."""
    H, W, C, N = meta["H"], meta["W"], meta["C"], meta["N"]
    B = x.shape[0]
    assert x.shape[1] == C, "coefficient count must match prepared basis"

    if meta["kind"] == "xla":
        out = jnp.dot(x, w, precision=jax.lax.Precision.HIGHEST,
                      preferred_element_type=jnp.float32).astype(out_dtype)
        return out.reshape(B, H, W)

    tile_n, num_tiles = meta["tile_n"], meta["num_tiles"]
    basis_bytes = jnp.dtype(w.dtype).itemsize
    out_bytes = jnp.dtype(out_dtype).itemsize

    # Actual per-step working set (double-buffered basis + f32 promotion +
    # double-buffered output + coefficients), with headroom, capped by the
    # physical VMEM of this generation.
    vmem_need = (2 * C * tile_n * basis_bytes
                 + C * tile_n * 4
                 + 2 * B * tile_n * out_bytes
                 + B * C * 4)
    cap = _vmem_capacity_bytes()
    vmem_limit = int(min(max(2 * vmem_need, 16 << 20), int(cap * 0.7)))
    vmem_limit = int(min(max(vmem_limit, int(vmem_need * 1.25)), int(cap * 0.9)))

    cost = pl.CostEstimate(
        flops=2 * B * C * num_tiles * tile_n,
        transcendentals=0,
        bytes_accessed=(C * num_tiles * tile_n * basis_bytes
                        + B * N * out_bytes
                        + B * C * 4),
    )

    out_flat = pl.pallas_call(
        _phase2d_kernel,
        out_shape=jax.ShapeDtypeStruct((B, N), out_dtype),
        grid_spec=pltpu.PrefetchScalarGridSpec(
            num_scalar_prefetch=0,
            grid=(num_tiles,),
            in_specs=[
                # Coefficients: full (B, C) block, reused by every pixel tile.
                pl.BlockSpec((B, C), lambda j: (0, 0)),
                # Basis: contiguous (C, tile_n) slab for pixel tile j.
                pl.BlockSpec((pl.Squeezed(), C, tile_n), lambda j: (j, 0, 0)),
            ],
            # Output written directly at width N (Pallas masks the partial
            # final tile) -> no post-kernel slice copy.
            out_specs=pl.BlockSpec((B, tile_n), lambda j: (0, j)),
        ),
        compiler_params=pltpu.CompilerParams(
            dimension_semantics=("parallel",),
            vmem_limit_bytes=vmem_limit,
        ),
        cost_estimate=cost,
    )(x.astype(jnp.float32), w)

    return out_flat.reshape(B, H, W)


def phase2d_forward(x, z_basis, *, dtype=jnp.bfloat16, out_dtype=jnp.float32,
                    force_pallas=False):
    """One-shot convenience matching Phase2D.apply(input, z_basis).

    For repeated calls (the normal layer use), call prepare_phase2d_basis()
    once and reuse its result with phase2d_apply().
    """
    w, meta = prepare_phase2d_basis(z_basis, dtype=dtype, force_pallas=force_pallas)
    return phase2d_apply(x, w, meta, out_dtype=out_dtype)


if __name__ == "__main__":
    # Small, module-consistent shapes.
    B = 2                  # batch
    input_features = 16    # number of Zernike coefficients
    output_features = 32   # phase-map side length (H = W)

    key = jax.random.PRNGKey(0)
    kx, kz = jax.random.split(key)

    x = jax.random.normal(kx, (B, input_features), dtype=jnp.float32)
    # TODO(synk): real aotools.zernikeArray values not reproduced; shapes/semantics only.
    z_basis = jax.random.normal(
        kz, (input_features + 1, output_features, output_features), dtype=jnp.float32
    )

    # Full-f32 PyTorch-equivalent reference.
    ref = jnp.sum(x[:, :, None, None] * z_basis[None, 1:, :, :], axis=1)

    # --- Pallas path (forced at these small shapes so the kernel is exercised).
    w_p, meta_p = prepare_phase2d_basis(z_basis, force_pallas=True)
    out = jax.block_until_ready(phase2d_apply(x, w_p, meta_p))
    assert out.shape == (B, output_features, output_features)

    # Tight check vs a reference using the same bf16-quantized basis
    # (isolates kernel correctness from streaming-dtype quantization).
    N = output_features * output_features
    T, Cw, TN = w_p.shape
    wq = w_p.transpose(1, 0, 2).reshape(Cw, T * TN)[:, :N].astype(jnp.float32)
    ref_q = jnp.sum(x[:, :, None] * wq[None, :, :], axis=1).reshape(out.shape)
    assert jnp.allclose(out, ref_q, atol=1e-3, rtol=1e-3)

    # Loose check vs full-f32 reference (only the basis is bf16-quantized now).
    rel_err = jnp.linalg.norm(out - ref) / jnp.linalg.norm(ref)
    assert rel_err < 1e-2

    # --- Auto-dispatch path (small problem -> exact-f32 XLA fallback).
    w_a, meta_a = prepare_phase2d_basis(z_basis)
    out_auto = jax.block_until_ready(phase2d_apply(x, w_a, meta_a))
    rel_auto = jnp.linalg.norm(out_auto - ref) / jnp.linalg.norm(ref)
    assert rel_auto < 1e-5

    print("KERNEL_OK")
</pallas_src>

<mosaic_0001>
module attributes {stable_mosaic.version = 11 : i64} {
  func.func @_phase2d_kernel(%arg0: i32, %arg1: memref<2x16xf32, #tpu.memory_space<vmem>>, %arg2: memref<1x16x512xbf16, #tpu.memory_space<vmem>>, %arg3: memref<2x512xf32, #tpu.memory_space<vmem>>) attributes {dimension_semantics = [#tpu.dimension_semantics<parallel>], iteration_bounds = array<i64: 2>, scalar_prefetch = 0 : i64, scratch_operands = 0 : i64, tpu.core_type = #tpu.core_type<tc>, window_params = [{pipeline_mode = #tpu.pipeline_mode<synchronous>, transform_indices = @transform_0, window_bounds = array<i64: 2, 16>}, {transform_indices = @transform_1, window_bounds = array<i64: 1, 16, 512>}, {transform_indices = @transform_2, window_bounds = array<i64: 2, 512>}]} {
    %c0 = arith.constant 0 : index
    %c0_0 = arith.constant 0 : index
    %0 = vector.load %arg1[%c0, %c0_0] : memref<2x16xf32, #tpu.memory_space<vmem>>, vector<2x16xf32>
    %c0_1 = arith.constant 0 : index
    %c0_2 = arith.constant 0 : index
    %c0_3 = arith.constant 0 : index
    %1 = vector.load %arg2[%c0_1, %c0_2, %c0_3] : memref<1x16x512xbf16, #tpu.memory_space<vmem>>, vector<1x16x512xbf16>
    %2 = vector.shape_cast %1 : vector<1x16x512xbf16> to vector<16x512xbf16>
    %cst = arith.constant dense<0.000000e+00> : vector<2x512xf32>
    %3 = tpu.matmul %0, %2, %cst {dimension_numbers = #tpu.dot_dimension_numbers<[1], [0], [0], [1], [0, 0, 1, 1], [], []>} : vector<2x16xf32>, vector<16x512xbf16>, vector<2x512xf32> -> vector<2x512xf32>
    %c0_4 = arith.constant 0 : index
    %c0_5 = arith.constant 0 : index
    %4 = vector.load %arg3[%c0_4, %c0_5] : memref<2x512xf32, #tpu.memory_space<vmem>>, vector<2x512xf32>
    tpu.vector_store %arg3[%c0_4, %c0_5], %3 {strides = array<i32>} : memref<2x512xf32, #tpu.memory_space<vmem>>, vector<2x512xf32>,
    return
  }
  func.func @transform_0(%arg0: i32) -> (i32, i32) {
    %c0_i32 = arith.constant 0 : i32
    %c0_i32_0 = arith.constant 0 : i32
    %c0_i32_1 = arith.constant 0 : i32
    return %c0_i32, %c0_i32_0 : i32, i32
  }
  func.func @transform_1(%arg0: i32) -> (i32, i32, i32) {
    %c0_i32 = arith.constant 0 : i32
    %c0_i32_0 = arith.constant 0 : i32
    %c0_i32_1 = arith.constant 0 : i32
    return %arg0, %c0_i32, %c0_i32_0 : i32, i32, i32
  }
  func.func @transform_2(%arg0: i32) -> (i32, i32) {
    %c0_i32 = arith.constant 0 : i32
    %c0_i32_0 = arith.constant 0 : i32
    return %c0_i32, %arg0 : i32, i32
  }
}

</mosaic_0001>

<llo_original>
// kernel: tpu_custom_call.1
$region0: #{tpu_custom_call.1}
  #allocation0 [shape = 'u32[]', space=smem, size = 0x4, offset = 0x4, fixed_abs, tag = 'smem constant byte address 0x4 - core index']
  #allocation1 [shape = 'u32[72,128]{1,0:T(1,128)}', space=vmem, size = 0x9000, scoped, tag = 'internal scratch']
  %s0 = inlined_call_operand.hbm [shape: f32[2,16], index: 0, kind: input, shape index: {}]
  %s1 = inlined_call_operand.hbm [shape: bf16[2,16,512], index: 1, kind: input, shape index: {}]
  %s2 = inlined_call_operand.hbm [shape: f32[2,1024], index: 2, kind: output, shape index: {}]
  %s3 = sld [smem:[#allocation0]]
  $region49: #{tpu_custom_call.1} parent=0
    _
  %s5 = ssub.s32 1, %s3
  %s6 = scalar_select 0, %s5, %s3
  $region1: #{tpu_custom_call.1} parent=0
    #allocation2 [shape = 'u8[1024]{0}', space=vmem, size = 0x400, scoped, tag = 'input window, operand 0, single buffered']
    #allocation3 [shape = 's32[2]{0}', space=sflag, size = 0x8, scoped, tag = 'scoped memory for tpu_custom_call.1']
    #allocation4 [shape = 's32[2]{0}', space=sflag, size = 0x8, scoped, tag = 'scoped memory for tpu_custom_call.1']
    #allocation5 [shape = 'u8[32768]{0}', space=vmem, size = 0x8000, scoped, tag = 'input window, operand 1']
    #allocation6 [shape = 's32[2]{0}', space=sflag, size = 0x8, scoped, tag = 'scoped memory for tpu_custom_call.1']
    #allocation7 [shape = 'u8[8192]{0}', space=vmem, size = 0x2000, scoped, tag = 'output window, operand 0']
    %7 = vsyncpa [#allocation3], 0
    %8 = vsyncpa [#allocation6], 0
    %s9 = scalar_lea.sflag [#allocation6], 1
    %10 = vsyncpa %s9, 0
    %11 = vsyncpa [#allocation4], 0
    %s12 = scalar_lea.sflag [#allocation4], 1
    %13 = vsyncpa %s12, 0
    loop: start=0, step=1, limit=4
    $region2: #{tpu_custom_call.1} parent=1 // loop_pre_header
      _
    $region3: #{tpu_custom_call.1} parent=1 // loop_header
      %s15 = sphi 0, %s19
      %p16 = scmp.ge.s32.totalorder %s15, 4
      %s23 = sphi 0, %s23
      %s25 = sphi 0, %s23
      %s26 = sphi 0, %s25
      %s40 = sphi 0, %s26
      %s46 = sphi 0, %s48
      %s49 = sphi 0, %s46
      %s50 = sphi 0, %s49
      %s66 = sphi 0, %s50
      %s72 = sphi 0, %s74
      %s75 = sphi 0, %s72
      %s76 = sphi 0, %s75
      %s92 = sphi 0, %s76
    $region4: #{tpu_custom_call.1} parent=1 // loop_header_branch
      %18 = sbr.rel (%p16) target = $region8
    $region5: #{tpu_custom_call.1} parent=1 // loop_body
      %s20 = ssub.s32 %s15, 1
      %s21 = ssub.s32 %s15, 2
      %s22 = sadd.s32 %s15, 1
      %s24 = sadd.s32 %s23, 1
      %p27 = scmp.eq.s32.totalorder %s15, 1
      %p28 = scmp.ne.s32.totalorder %s23, %s25
      %p29 = scmp.eq.s32.totalorder %s15, 0
      %p30 = por %p28, %p29
      %p31 = scmp.ne.s32.totalorder %s23, %s25
      %p32 = scmp.eq.s32.totalorder %s20, 1
      %p33 = por %p31, %p32
      %p34 = scmp.ne.s32.totalorder %s25, %s26
      %p35 = scmp.eq.s32.totalorder %s20, 0
      %p36 = por %p34, %p35
      %p37 = scmp.ne.s32.totalorder %s25, %s26
      %p38 = scmp.eq.s32.totalorder %s21, 1
      %p39 = por %p37, %p38
      %p41 = scmp.ne.s32.totalorder %s26, %s40
      %p42 = scmp.eq.s32.totalorder %s21, 0
      %p43 = por %p41, %p42
      %s44 = ssub.s32 %s15, %s22
      %p45 = scmp.eq.s32.totalorder %s44, 0
      %s47 = sadd.s32 %s46, 1
      %s48 = scalar_select %p45, %s46, %s47
      %p51 = pneg %p45
      %p52 = scmp.eq.s32.totalorder %s15, 1
      %p53 = por %p51, %p52
      %p54 = scmp.ne.s32.totalorder %s46, %s49
      %p55 = scmp.eq.s32.totalorder %s15, 0
      %p56 = por %p54, %p55
      %p57 = scmp.ne.s32.totalorder %s46, %s49
      %p58 = scmp.eq.s32.totalorder %s20, 1
      %p59 = por %p57, %p58
      %p60 = scmp.ne.s32.totalorder %s49, %s50
      %p61 = scmp.eq.s32.totalorder %s20, 0
      %p62 = por %p60, %p61
      %p63 = scmp.ne.s32.totalorder %s49, %s50
      %p64 = scmp.eq.s32.totalorder %s21, 1
      %p65 = por %p63, %p64
      %p67 = scmp.ne.s32.totalorder %s50, %s66
      %p68 = scmp.eq.s32.totalorder %s21, 0
      %p69 = por %p67, %p68
      %s70 = ssub.s32 %s15, %s22
      %p71 = scmp.eq.s32.totalorder %s70, 0
      %s73 = sadd.s32 %s72, 1
      %s74 = scalar_select %p71, %s72, %s73
      %p77 = pneg %p71
      %p78 = scmp.eq.s32.totalorder %s15, 1
      %p79 = por %p77, %p78
      %p80 = scmp.ne.s32.totalorder %s72, %s75
      %p81 = scmp.eq.s32.totalorder %s15, 0
      %p82 = por %p80, %p81
      %p83 = scmp.ne.s32.totalorder %s72, %s75
      %p84 = scmp.eq.s32.totalorder %s20, 1
      %p85 = por %p83, %p84
      %p86 = scmp.ne.s32.totalorder %s75, %s76
      %p87 = scmp.eq.s32.totalorder %s20, 0
      %p88 = por %p86, %p87
      %p89 = scmp.ne.s32.totalorder %s75, %s76
      %p90 = scmp.eq.s32.totalorder %s21, 1
      %p91 = por %p89, %p90
      %p93 = scmp.ne.s32.totalorder %s76, %s92
      %p94 = scmp.eq.s32.totalorder %s21, 0
      %p95 = por %p93, %p94
      %p96 = scmp.le.s32.totalorder 1, %s15
      %p97 = scmp.lt.s32.totalorder %s15, 3
      %p98 = pnand %p96, %p97
      %p99 = pneg %p98
      // Predicated region
      $region9: #{tpu_custom_call.1} parent=5 // pred_check
        _
      $region10: #{tpu_custom_call.1} parent=5 // pred_check_branch
        %101 = sbr.rel (%p98) target = $region12
      $region11: #{tpu_custom_call.1} parent=5 // pred_region
        %s102 = ssub.s32 %s15, 1
        // Predicated region
        $region13: #{tpu_custom_call.1} parent=11 // pred_check
          %p103 = pneg %p36
        $region14: #{tpu_custom_call.1} parent=11 // pred_check_branch
          %105 = sbr.rel (%p103) target = $region16
        $region15: #{tpu_custom_call.1} parent=11 // pred_region
          %107 = vsyncadd [#allocation3], 0
          %s109 = sshll.u32 %s0, 4
          %s110 = int_to_ptr.hbm [resolvable:$true] %s109
          %s111 = sshll.u32 [#allocation2], 4
          %s112 = int_to_ptr.vmem [resolvable:$true] %s111
          %114 = dma.hbm_to_vmem [thread:$0]  %s110, 32, %s112, [#allocation3]
        $region16: #{tpu_custom_call.1} parent=11 // pred_fallthru
          _
      $region12: #{tpu_custom_call.1} parent=5 // pred_fallthru
        _
      %p115 = scmp.lt.s32.totalorder %s15, 2
      // Predicated region
      $region17: #{tpu_custom_call.1} parent=5 // pred_check
        %p116 = pneg %p115
      $region18: #{tpu_custom_call.1} parent=5 // pred_check_branch
        %118 = sbr.rel (%p116) target = $region20
      $region19: #{tpu_custom_call.1} parent=5 // pred_region
        // Predicated region
        $region21: #{tpu_custom_call.1} parent=19 // pred_check
          %p119 = pneg %p56
        $region22: #{tpu_custom_call.1} parent=19 // pred_check_branch
          %121 = sbr.rel (%p119) target = $region24
        $region23: #{tpu_custom_call.1} parent=19 // pred_region
          %s122 = sand.u32 %s46, 1
          %s123 = scalar_lea.sflag [#allocation6], %s122
          %s124 = sand.u32 %s46, 1
          %s125 = smul.addr %s124, 32
          %s126 = scalar_lea.vmem [#allocation5], %s125
          %128 = vsyncadd %s123, 0
          %s129 = smul.addr %s15, 8
          %s130 = smul.addr %s129, 4
          %s131 = scalar_lea.hbm %s1, %s130
          %s132 = sshll.u32 %s131, 4
          %s133 = int_to_ptr.hbm [resolvable:$true] %s132
          %s134 = sshll.u32 %s126, 4
          %s135 = int_to_ptr.vmem [resolvable:$true] %s134
          %140 = dma.hbm_to_vmem [thread:$0]  %s133, 512, %s135, %s123, 256, 256, 16
        $region24: #{tpu_custom_call.1} parent=19 // pred_fallthru
          _
      $region20: #{tpu_custom_call.1} parent=5 // pred_fallthru
        _
      %p141 = scmp.le.s32.totalorder 1, %s15
      %p142 = scmp.lt.s32.totalorder %s15, 3
      %p143 = pnand %p141, %p142
      %p144 = pneg %p143
      // Predicated region
      $region25: #{tpu_custom_call.1} parent=5 // pred_check
        _
      $region26: #{tpu_custom_call.1} parent=5 // pred_check_branch
        %146 = sbr.rel (%p143) target = $region28
      $region27: #{tpu_custom_call.1} parent=5 // pred_region
        %s147 = ssub.s32 %s15, 1
        // Predicated region
        $region29: #{tpu_custom_call.1} parent=27 // pred_check
          %p148 = pneg %p36
        $region30: #{tpu_custom_call.1} parent=27 // pred_check_branch
          %150 = sbr.rel (%p148) target = $region32
        $region31: #{tpu_custom_call.1} parent=27 // pred_region
          %152 = dma.done [#allocation3], 32
        $region32: #{tpu_custom_call.1} parent=27 // pred_fallthru
          _
        %s153 = sand.u32 %s49, 1
        %s154 = scalar_lea.sflag [#allocation6], %s153
        %s155 = sand.u32 %s49, 1
        %s156 = smul.addr %s155, 32
        %s157 = scalar_lea.vmem [#allocation5], %s156
        // Predicated region
        $region33: #{tpu_custom_call.1} parent=27 // pred_check
          %p158 = pneg %p62
        $region34: #{tpu_custom_call.1} parent=27 // pred_check_branch
          %160 = sbr.rel (%p158) target = $region36
        $region35: #{tpu_custom_call.1} parent=27 // pred_region
          %162 = dma.done %s154, 512
        $region36: #{tpu_custom_call.1} parent=27 // pred_fallthru
          _
        %p163 = pneg %p36
        %p164 = pneg %p33
        %s165 = sand.u32 %s49, 1
        %s166 = scalar_lea.sflag [#allocation6], %s165
        %s167 = sand.u32 %s49, 1
        %s168 = smul.addr %s167, 32
        %s169 = scalar_lea.vmem [#allocation5], %s168
        %p170 = pneg %p62
        %p171 = pneg %p59
        %p172 = pneg %p88
        %p173 = pneg %p85
        %s174 = sand.u32 %s75, 1
        %s175 = scalar_lea.sflag [#allocation4], %s174
        %s176 = sand.u32 %s75, 1
        %s177 = smul.addr %s176, 8
        %s178 = scalar_lea.vmem [#allocation7], %s177
        %s179 = smul.u32 4, %s20
        %v181 = vld [vmem:[#allocation2] sm:$0x3]
        %v182 = vld [vmem:[%s157] sm:$0xff]
        %v183 = vld [vmem:[%s157 + $0x8] sm:$0xff]
        %v184 = vld [vmem:[%s157 + $0x10] sm:$0xff]
        %v185 = vld [vmem:[%s157 + $0x18] sm:$0xff]
        %v190 = vunpack.c.l.b16 %v182
        %v191 = vunpack.c.h.b16 %v182
        %v192 = vunpack.c.l.b16 %v183
        %v193 = vunpack.c.h.b16 %v183
        %v194 = vunpack.c.l.b16 %v184
        %v195 = vunpack.c.h.b16 %v184
        %v196 = vunpack.c.l.b16 %v185
        %v197 = vunpack.c.h.b16 %v185
        %v198 = vpack.c.b16 %v194, %v190
        %v199 = vpack.c.b16 %v195, %v191
        %v200 = vpack.c.b16 %v196, %v192
        %v201 = vpack.c.b16 %v197, %v193
        %vm206 = vcmask 130048
        %v208 = vsel %vm206, %v181, 0
        %210 = vmatpush.bf16.msra.mxu0 0
        %211 = vmatpush.bf16.msra.mxu0 0
        %212 = vmatpush.bf16.msra.mxu0 0
        %213 = vmatpush.bf16.msra.mxu0 0
        %214 = vmatpush.bf16.msra.mxu0 0
        %215 = vmatpush.bf16.msra.mxu0 0
        %216 = vmatpush.bf16.msra.mxu0 0
        %217 = vmatpush.bf16.msra.mxu0 %v198
        %218 = vmatmul.f32.gmra.mxu0 %v208
        %v219 = vpop.f32.mrf.mxu0
        %v220 = vadd.f32 0.0, %v219
        %221 = vdwg.mxu0
        %222 = vmatpush.bf16.msra.mxu0 0
        %223 = vmatpush.bf16.msra.mxu0 0
        %224 = vmatpush.bf16.msra.mxu0 0
        %225 = vmatpush.bf16.msra.mxu0 0
        %226 = vmatpush.bf16.msra.mxu0 0
        %227 = vmatpush.bf16.msra.mxu0 0
        %228 = vmatpush.bf16.msra.mxu0 0
        %229 = vmatpush.bf16.msra.mxu0 %v199
        %230 = vmatmul.f32.gmra.mxu0 %v208
        %v231 = vpop.f32.mrf.mxu0
        %v232 = vadd.f32 0.0, %v231
        %233 = vdwg.mxu0
        %234 = vmatpush.bf16.msra.mxu0 0
        %235 = vmatpush.bf16.msra.mxu0 0
        %236 = vmatpush.bf16.msra.mxu0 0
        %237 = vmatpush.bf16.msra.mxu0 0
        %238 = vmatpush.bf16.msra.mxu0 0
        %239 = vmatpush.bf16.msra.mxu0 0
        %240 = vmatpush.bf16.msra.mxu0 0
        %241 = vmatpush.bf16.msra.mxu0 %v200
        %242 = vmatmul.f32.gmra.mxu0 %v208
        %v243 = vpop.f32.mrf.mxu0
        %v244 = vadd.f32 0.0, %v243
        %245 = vdwg.mxu0
        %246 = vmatpush.bf16.msra.mxu0 0
        %247 = vmatpush.bf16.msra.mxu0 0
        %248 = vmatpush.bf16.msra.mxu0 0
        %249 = vmatpush.bf16.msra.mxu0 0
        %250 = vmatpush.bf16.msra.mxu0 0
        %251 = vmatpush.bf16.msra.mxu0 0
        %252 = vmatpush.bf16.msra.mxu0 0
        %253 = vmatpush.bf16.msra.mxu0 %v201
        %254 = vmatmul.f32.gmra.mxu0 %v208
        %v255 = vpop.f32.mrf.mxu0
        %v256 = vadd.f32 0.0, %v255
        %257 = vdwg.mxu0
        %v262 = vrot.slane %v232, 6
        %v263 = vrot.slane %v244, 4
        %v264 = vrot.slane %v256, 2
        %vm265 = vcmask 1041408
        %v266 = vsel %vm265, %v220, %v262
        %vm267 = vcmask 1045508
        %v268 = vsel %vm267, %v263, %v264
        %vm269 = vcmask 1043456
        %v270 = vsel %vm269, %v266, %v268
        %272 = vst [vmem:[%s178] sm:$0xff] %v270
        %s273 = sand.u32 %s75, 1
        %s274 = scalar_lea.sflag [#allocation4], %s273
        %s275 = sand.u32 %s75, 1
        %s276 = smul.addr %s275, 8
        %s277 = scalar_lea.vmem [#allocation7], %s276
        // Predicated region
        $region37: #{tpu_custom_call.1} parent=27 // pred_check
          %p278 = pneg %p85
        $region38: #{tpu_custom_call.1} parent=27 // pred_check_branch
          %280 = sbr.rel (%p278) target = $region40
        $region39: #{tpu_custom_call.1} parent=27 // pred_region
          %s281 = smul.u32 4, %s20
          %283 = vsyncadd %s274, 0
          %s284 = smul.addr %s281, 2
          %s285 = scalar_lea.hbm %s2, %s284
          %s287 = sshll.u32 %s277, 4
          %s288 = int_to_ptr.vmem [resolvable:$true] %s287
          %s289 = sshll.u32 %s285, 4
          %s290 = int_to_ptr.hbm [resolvable:$true] %s289
          %292 = dma.vmem_to_hbm [thread:$0]  %s288, 128, %s290, %s274
        $region40: #{tpu_custom_call.1} parent=27 // pred_fallthru
          _
      $region28: #{tpu_custom_call.1} parent=5 // pred_fallthru
        _
      %p293 = scmp.le.s32.totalorder 2, %s15
      // Predicated region
      $region41: #{tpu_custom_call.1} parent=5 // pred_check
        %p294 = pneg %p293
      $region42: #{tpu_custom_call.1} parent=5 // pred_check_branch
        %296 = sbr.rel (%p294) target = $region44
      $region43: #{tpu_custom_call.1} parent=5 // pred_region
        %s297 = ssub.s32 %s15, 2
        // Predicated region
        $region45: #{tpu_custom_call.1} parent=43 // pred_check
          %p298 = pneg %p91
        $region46: #{tpu_custom_call.1} parent=43 // pred_check_branch
          %300 = sbr.rel (%p298) target = $region48
        $region47: #{tpu_custom_call.1} parent=43 // pred_region
          %s301 = sand.u32 %s76, 1
          %s302 = scalar_lea.sflag [#allocation4], %s301
          %s303 = sand.u32 %s76, 1
          %s304 = smul.addr %s303, 8
          %s305 = scalar_lea.vmem [#allocation7], %s304
          %307 = dma.done %s302, 128
        $region48: #{tpu_custom_call.1} parent=43 // pred_fallthru
          _
      $region44: #{tpu_custom_call.1} parent=5 // pred_fallthru
        _
    $region6: #{tpu_custom_call.1} parent=1 // loop_footer
      %s19 = sadd.s32 1, %s15
    $region7: #{tpu_custom_call.1} parent=1 // loop_footer_branch
      %14 = sbr.rel target = $region3
    $region8: #{tpu_custom_call.1} parent=1 // loop_exit
      _
    %308 = vsyncpa [#allocation3], 1
    %s309 = scalar_lea.sflag [#allocation3], 1
    %310 = vsyncpa %s309, 1
    %311 = vsyncpa [#allocation6], 1
    %s312 = scalar_lea.sflag [#allocation6], 1
    %313 = vsyncpa %s312, 1
    %314 = vsyncpa [#allocation4], 1
    %s315 = scalar_lea.sflag [#allocation4], 1
    %316 = vsyncpa %s315, 1

</llo_original>
